<compile_context>
chip_gen: v7x
topology: tpu7x:2x2x1
jax: 0.10.0
libtpu: 0.0.40
codegen_flags: <defaults>
</compile_context>

<pallas_src>
import jax
import jax.numpy as jnp
from jax.experimental import pallas as pl
from jax.experimental.pallas import tpu as pltpu


def _round_up(x, m):
    return ((x + m - 1) // m) * m


def prepare_params(params, height, width):
    """One-time conversion from torch-layout (OIHW) params to kernel layout.

    Also pre-builds the (1, PP) interior mask (depends only on H, W) so the
    per-call wrapper carries no mask-construction fusion.
    """
    (w1, b1), (w2, b2) = params
    c1 = w1.shape[0]                       # 16
    c2 = w2.shape[0]                       # 32
    # layer 1: (C1, 9) with tap index kh*3+kw on the contraction dim (Cin=1).
    w1t = w1.reshape(c1, -1).astype(jnp.bfloat16)
    # layer 2: (C2, 9*C1), contraction ordered (tap-major, channel-minor) to
    # match the in-kernel concatenation of the 9 shifted scratch slices.
    w2cat = jnp.transpose(w2, (0, 2, 3, 1)).reshape(c2, -1).astype(jnp.bfloat16)
    b1c = b1.reshape(c1, 1).astype(jnp.float32)
    b2c = b2.reshape(c2, 1).astype(jnp.float32)

    # interior mask over one image's lane-padded flattened padded grid.
    hp, wp = height + 2, width + 2
    p = hp * wp
    pp = _round_up(p, 128)
    hh = jnp.arange(hp)
    ww = jnp.arange(wp)
    m2 = (((hh >= 1) & (hh <= height))[:, None] &
          ((ww >= 1) & (ww <= width))[None, :]).reshape(1, p).astype(jnp.float32)
    mask = jnp.pad(m2, ((0, 0), (0, pp - p)))          # zeros in the pad lanes
    return (w1t, b1c, w2cat, b2c, mask)


def encoder_block(x_nchw, kparams, images_per_step=1):
    """Fused EncoderBlock forward. Input NCHW (Cin=1), output NCHW (f32)."""
    w1t, b1c, w2cat, b2c, mask = kparams
    N, Cin, H, W = x_nchw.shape
    assert Cin == 1, "EncoderBlock spec has a single input channel"
    C1 = w1t.shape[0]
    C2 = w2cat.shape[0]
    Hp, Wp = H + 2, W + 2
    P = Hp * Wp                      # flattened padded spatial size (324)
    PP = _round_up(P, 128)           # lane-padded size (384): lane-dense stores
    assert mask.shape == (1, PP), "kparams were prepared for a different H/W"
    G = 128                          # guard width -> interior store is aligned
    ipg = images_per_step            # images folded into the lane dim per step
    assert N % ipg == 0
    n_steps = N // ipg
    LANES = ipg * PP

    # ---- tiny plain-JAX glue: pad=2 + Cin=1 im2col, lane-pad, batch fold -----
    # TODO(synk): for large H/W move this im2col into the kernel (see header).
    xpp = jnp.pad(x_nchw[:, 0], ((0, 0), (2, 2), (2, 2)))             # (N,H+4,W+4)
    patches = jnp.stack(
        [xpp[:, kh:kh + Hp, kw:kw + Wp].reshape(N, P)
         for kh in range(3) for kw in range(3)], axis=1)              # (N, 9, P)
    patches = jnp.pad(patches, ((0, 0), (0, 0), (0, PP - P)))         # (N, 9, PP)
    patches = (patches.reshape(n_steps, ipg, 9, PP)
               .transpose(0, 2, 1, 3)
               .reshape(n_steps, 9, LANES)
               .astype(jnp.bfloat16))                                 # (S, 9, L)

    def kernel(x9_ref, w1_ref, b1_ref, w2_ref, b2_ref, m_ref, o_ref, y1g_ref):
        # Zero only the two 128-lane guard bands (one packed bf16 vreg each);
        # the interior region is fully overwritten below.
        zg = jnp.zeros((C1, G), y1g_ref.dtype)
        y1g_ref[:, :G] = zg
        y1g_ref[:, G + LANES:] = zg

        # ---- layer 1: one (C1,9)x(9,LANES) matmul over ALL padded positions --
        y1 = jnp.dot(w1_ref[...], x9_ref[0],
                     preferred_element_type=jnp.float32)              # (C1, L) f32
        m = m_ref[...]
        if ipg > 1:
            m = jnp.concatenate([m] * ipg, axis=1)                    # (1, L)
        # bias + ReLU, then zero the padding ring (= layer-2 zero padding) and
        # the lane-pad region; store lane-dense + 128-aligned, stays in VMEM.
        y1 = jnp.maximum(y1 + b1_ref[...], 0.0) * m
        y1g_ref[:, G:G + LANES] = y1.astype(y1g_ref.dtype)

        # ---- layer 2: ONE (C2, 9*C1)x(9*C1, LANES) matmul, f32 accumulate ----
        # Concatenate the 9 constant-lane-shifted taps along the contraction
        # axis; per-image zero lanes (padding ring + lane pad) plus the guard
        # bands make every cross-boundary read a zero, so interior outputs are
        # exact and padded-ring outputs (cropped later) are harmless.
        base = G - (Wp + 1)
        xk = jnp.concatenate(
            [y1g_ref[:, base + kh * Wp + kw: base + kh * Wp + kw + LANES]
             for kh in range(3) for kw in range(3)], axis=0)          # (9*C1, L)
        acc = jnp.dot(w2_ref[...], xk, preferred_element_type=jnp.float32)
        o_ref[0] = jnp.maximum(acc + b2_ref[...], 0.0)                # (C2, L) f32

    out_pad = pl.pallas_call(
        kernel,
        out_shape=jax.ShapeDtypeStruct((n_steps, C2, LANES), jnp.float32),
        grid=(n_steps,),
        in_specs=[
            pl.BlockSpec((1, 9, LANES), lambda n: (n, 0, 0)),   # im2col patches
            pl.BlockSpec((C1, 9), lambda n: (0, 0)),            # w1t
            pl.BlockSpec((C1, 1), lambda n: (0, 0)),            # b1
            pl.BlockSpec((C2, 9 * C1), lambda n: (0, 0)),       # w2 (K=144 cat)
            pl.BlockSpec((C2, 1), lambda n: (0, 0)),            # b2
            pl.BlockSpec((1, PP), lambda n: (0, 0)),            # interior mask
        ],
        out_specs=pl.BlockSpec((1, C2, LANES), lambda n: (n, 0, 0)),
        scratch_shapes=[pltpu.VMEM((C1, 2 * G + LANES), jnp.bfloat16)],
        compiler_params=pltpu.CompilerParams(
            dimension_semantics=("parallel",)),                 # v7x: 1 step / TC
    )(patches, w1t, b1c, w2cat, b2c, mask)

    # Output is channels-major; unfold batch, drop lane pad, crop interior.
    out = (out_pad.reshape(n_steps, C2, ipg, PP)
           .transpose(0, 2, 1, 3)
           .reshape(N, C2, PP))
    return out[:, :, :P].reshape(N, C2, Hp, Wp)[:, :, 1:H + 1, 1:W + 1]


def init_conv_params(key, cin, cout, k=3):
    """Deterministic PyTorch-default-like init. Weights stored OIHW (torch)."""
    kw_, kb = jax.random.split(key)
    fan_in = cin * k * k
    bound = 1.0 / (fan_in ** 0.5)
    w = jax.random.uniform(kw_, (cout, cin, k, k), jnp.float32, -bound, bound)
    b = jax.random.uniform(kb, (cout,), jnp.float32, -bound, bound)
    return w, b


def reference(x_nchw, params):
    """Plain-JAX f32 reference (matches torch nn.Conv2d cross-correlation)."""
    def conv(x, w, b):
        y = jax.lax.conv_general_dilated(
            x, w, window_strides=(1, 1), padding="SAME",
            dimension_numbers=("NCHW", "OIHW", "NCHW"),
            precision=jax.lax.Precision.HIGHEST)
        return jnp.maximum(y + b[None, :, None, None], 0.0)
    (w1, b1), (w2, b2) = params
    return conv(conv(x_nchw, w1, b1), w2, b2)


if __name__ == "__main__":
    key = jax.random.PRNGKey(0)
    kx, k1, k2 = jax.random.split(key, 3)

    # Small shapes consistent with the module: batch=2, 1 input channel, 16x16.
    x = jax.random.normal(kx, (2, 1, 16, 16), jnp.float32)            # NCHW
    params = (init_conv_params(k1, 1, 16), init_conv_params(k2, 16, 32))
    kparams = prepare_params(params, 16, 16)     # weight/mask layout prep, once

    fwd = jax.jit(encoder_block, static_argnames=("images_per_step",))
    ref = jax.block_until_ready(reference(x, params))

    # Default config: one image per grid step (2 steps -> one per TC on v7x).
    out = jax.block_until_ready(fwd(x, kparams))
    assert out.shape == (2, 32, 16, 16), out.shape
    # bf16 MXU inputs (+ bf16 scratch) vs. f32 HIGHEST-precision reference.
    max_err = float(jnp.max(jnp.abs(out - ref)))
    assert jnp.allclose(out, ref, atol=3e-2, rtol=3e-2), max_err

    # Batch folded into the lane dim: single grid step (preferred on v5e/v6e).
    out2 = jax.block_until_ready(fwd(x, kparams, images_per_step=2))
    max_err2 = float(jnp.max(jnp.abs(out2 - ref)))
    assert jnp.allclose(out2, ref, atol=3e-2, rtol=3e-2), max_err2

    print("KERNEL_OK")
</pallas_src>

<mosaic_0001>
module attributes {stable_mosaic.version = 11 : i64} {
  func.func @kernel(%arg0: i32, %arg1: memref<1x9x384xbf16, #tpu.memory_space<vmem>>, %arg2: memref<16x9xbf16, #tpu.memory_space<vmem>>, %arg3: memref<16x1xf32, #tpu.memory_space<vmem>>, %arg4: memref<32x144xbf16, #tpu.memory_space<vmem>>, %arg5: memref<32x1xf32, #tpu.memory_space<vmem>>, %arg6: memref<1x384xf32, #tpu.memory_space<vmem>>, %arg7: memref<1x32x384xf32, #tpu.memory_space<vmem>>, %arg8: memref<16x640xbf16, #tpu.memory_space<vmem>>) attributes {dimension_semantics = [#tpu.dimension_semantics<parallel>], iteration_bounds = array<i64: 2>, scalar_prefetch = 0 : i64, scratch_operands = 1 : i64, tpu.core_type = #tpu.core_type<tc>, window_params = [{transform_indices = @transform_0, window_bounds = array<i64: 1, 9, 384>}, {pipeline_mode = #tpu.pipeline_mode<synchronous>, transform_indices = @transform_1, window_bounds = array<i64: 16, 9>}, {pipeline_mode = #tpu.pipeline_mode<synchronous>, transform_indices = @transform_2, window_bounds = array<i64: 16, 1>}, {pipeline_mode = #tpu.pipeline_mode<synchronous>, transform_indices = @transform_3, window_bounds = array<i64: 32, 144>}, {pipeline_mode = #tpu.pipeline_mode<synchronous>, transform_indices = @transform_4, window_bounds = array<i64: 32, 1>}, {pipeline_mode = #tpu.pipeline_mode<synchronous>, transform_indices = @transform_5, window_bounds = array<i64: 1, 384>}, {transform_indices = @transform_6, window_bounds = array<i64: 1, 32, 384>}]} {
    %cst = arith.constant 0.000000e+00 : bf16
    %0 = vector.broadcast %cst : bf16 to vector<16x128xbf16>
    %c0 = arith.constant 0 : index
    %c0_0 = arith.constant 0 : index
    %1 = vector.load %arg8[%c0, %c0_0] : memref<16x640xbf16, #tpu.memory_space<vmem>>, vector<16x128xbf16>
    tpu.vector_store %arg8[%c0, %c0_0], %0 {strides = array<i32>} : memref<16x640xbf16, #tpu.memory_space<vmem>>, vector<16x128xbf16>,
    %c0_1 = arith.constant 0 : index
    %c512 = arith.constant 512 : index
    %2 = vector.load %arg8[%c0_1, %c512] : memref<16x640xbf16, #tpu.memory_space<vmem>>, vector<16x128xbf16>
    tpu.vector_store %arg8[%c0_1, %c512], %0 {strides = array<i32>} : memref<16x640xbf16, #tpu.memory_space<vmem>>, vector<16x128xbf16>,
    %c0_2 = arith.constant 0 : index
    %c0_3 = arith.constant 0 : index
    %3 = vector.load %arg2[%c0_2, %c0_3] : memref<16x9xbf16, #tpu.memory_space<vmem>>, vector<16x9xbf16>
    %c0_4 = arith.constant 0 : index
    %c0_5 = arith.constant 0 : index
    %c0_6 = arith.constant 0 : index
    %4 = vector.load %arg1[%c0_4, %c0_5, %c0_6] : memref<1x9x384xbf16, #tpu.memory_space<vmem>>, vector<1x9x384xbf16>
    %5 = vector.shape_cast %4 : vector<1x9x384xbf16> to vector<9x384xbf16>
    %cst_7 = arith.constant dense<0.000000e+00> : vector<16x384xf32>
    %6 = tpu.matmul %3, %5, %cst_7 {dimension_numbers = #tpu.dot_dimension_numbers<[1], [0], [0], [1], [0, 0, 1, 1], [], []>} : vector<16x9xbf16>, vector<9x384xbf16>, vector<16x384xf32> -> vector<16x384xf32>
    %c0_8 = arith.constant 0 : index
    %c0_9 = arith.constant 0 : index
    %7 = vector.load %arg6[%c0_8, %c0_9] : memref<1x384xf32, #tpu.memory_space<vmem>>, vector<1x384xf32>
    %c0_10 = arith.constant 0 : index
    %c0_11 = arith.constant 0 : index
    %8 = vector.load %arg3[%c0_10, %c0_11] : memref<16x1xf32, #tpu.memory_space<vmem>>, vector<16x1xf32>
    %9 = vector.broadcast %8 : vector<16x1xf32> to vector<16x384xf32>
    %10 = arith.addf %6, %9 : vector<16x384xf32>
    %cst_12 = arith.constant 0.000000e+00 : f32
    %11 = vector.broadcast %cst_12 : f32 to vector<16x384xf32>
    %12 = arith.maximumf %10, %11 : vector<16x384xf32>
    %13 = vector.broadcast %7 : vector<1x384xf32> to vector<16x384xf32>
    %14 = arith.mulf %12, %13 : vector<16x384xf32>
    %15 = arith.truncf %14 : vector<16x384xf32> to vector<16x384xbf16>
    %c0_13 = arith.constant 0 : index
    %c128 = arith.constant 128 : index
    %16 = vector.load %arg8[%c0_13, %c128] : memref<16x640xbf16, #tpu.memory_space<vmem>>, vector<16x384xbf16>
    tpu.vector_store %arg8[%c0_13, %c128], %15 {strides = array<i32>} : memref<16x640xbf16, #tpu.memory_space<vmem>>, vector<16x384xbf16>,
    %c0_14 = arith.constant 0 : index
    %c109 = arith.constant 109 : index
    %17 = vector.load %arg8[%c0_14, %c109] : memref<16x640xbf16, #tpu.memory_space<vmem>>, vector<16x384xbf16>
    %c0_15 = arith.constant 0 : index
    %c110 = arith.constant 110 : index
    %18 = vector.load %arg8[%c0_15, %c110] : memref<16x640xbf16, #tpu.memory_space<vmem>>, vector<16x384xbf16>
    %c0_16 = arith.constant 0 : index
    %c111 = arith.constant 111 : index
    %19 = vector.load %arg8[%c0_16, %c111] : memref<16x640xbf16, #tpu.memory_space<vmem>>, vector<16x384xbf16>
    %c0_17 = arith.constant 0 : index
    %c127 = arith.constant 127 : index
    %20 = vector.load %arg8[%c0_17, %c127] : memref<16x640xbf16, #tpu.memory_space<vmem>>, vector<16x384xbf16>
    %c0_18 = arith.constant 0 : index
    %c128_19 = arith.constant 128 : index
    %21 = vector.load %arg8[%c0_18, %c128_19] : memref<16x640xbf16, #tpu.memory_space<vmem>>, vector<16x384xbf16>
    %c0_20 = arith.constant 0 : index
    %c129 = arith.constant 129 : index
    %22 = vector.load %arg8[%c0_20, %c129] : memref<16x640xbf16, #tpu.memory_space<vmem>>, vector<16x384xbf16>
    %c0_21 = arith.constant 0 : index
    %c145 = arith.constant 145 : index
    %23 = vector.load %arg8[%c0_21, %c145] : memref<16x640xbf16, #tpu.memory_space<vmem>>, vector<16x384xbf16>
    %c0_22 = arith.constant 0 : index
    %c146 = arith.constant 146 : index
    %24 = vector.load %arg8[%c0_22, %c146] : memref<16x640xbf16, #tpu.memory_space<vmem>>, vector<16x384xbf16>
    %c0_23 = arith.constant 0 : index
    %c147 = arith.constant 147 : index
    %25 = vector.load %arg8[%c0_23, %c147] : memref<16x640xbf16, #tpu.memory_space<vmem>>, vector<16x384xbf16>
    %26 = tpu.concatenate %17, %18, %19, %20, %21, %22, %23, %24, %25 in 0 : vector<16x384xbf16>, vector<16x384xbf16>, vector<16x384xbf16>, vector<16x384xbf16>, vector<16x384xbf16>, vector<16x384xbf16>, vector<16x384xbf16>, vector<16x384xbf16>, vector<16x384xbf16> -> vector<144x384xbf16>
    %c0_24 = arith.constant 0 : index
    %c0_25 = arith.constant 0 : index
    %27 = vector.load %arg4[%c0_24, %c0_25] : memref<32x144xbf16, #tpu.memory_space<vmem>>, vector<32x144xbf16>
    %cst_26 = arith.constant dense<0.000000e+00> : vector<32x384xf32>
    %28 = tpu.matmul %27, %26, %cst_26 {dimension_numbers = #tpu.dot_dimension_numbers<[1], [0], [0], [1], [0, 0, 1, 1], [], []>} : vector<32x144xbf16>, vector<144x384xbf16>, vector<32x384xf32> -> vector<32x384xf32>
    %c0_27 = arith.constant 0 : index
    %c0_28 = arith.constant 0 : index
    %29 = vector.load %arg5[%c0_27, %c0_28] : memref<32x1xf32, #tpu.memory_space<vmem>>, vector<32x1xf32>
    %30 = vector.broadcast %29 : vector<32x1xf32> to vector<32x384xf32>
    %31 = arith.addf %28, %30 : vector<32x384xf32>
    %cst_29 = arith.constant 0.000000e+00 : f32
    %32 = vector.broadcast %cst_29 : f32 to vector<32x384xf32>
    %33 = arith.maximumf %31, %32 : vector<32x384xf32>
    %c0_30 = arith.constant 0 : index
    %c0_31 = arith.constant 0 : index
    %c0_32 = arith.constant 0 : index
    %34 = vector.load %arg7[%c0_30, %c0_31, %c0_32] : memref<1x32x384xf32, #tpu.memory_space<vmem>>, vector<1x32x384xf32>
    %35 = vector.shape_cast %34 : vector<1x32x384xf32> to vector<32x384xf32>
    %36 = vector.shape_cast %33 : vector<32x384xf32> to vector<1x32x384xf32>
    tpu.vector_store %arg7[%c0_30, %c0_31, %c0_32], %36 {strides = array<i32>} : memref<1x32x384xf32, #tpu.memory_space<vmem>>, vector<1x32x384xf32>,
    return
  }
  func.func @transform_0(%arg0: i32) -> (i32, i32, i32) {
    %c0_i32 = arith.constant 0 : i32
    %c0_i32_0 = arith.constant 0 : i32
    %c0_i32_1 = arith.constant 0 : i32
    return %arg0, %c0_i32, %c0_i32_0 : i32, i32, i32
  }
  func.func @transform_1(%arg0: i32) -> (i32, i32) {
    %c0_i32 = arith.constant 0 : i32
    %c0_i32_0 = arith.constant 0 : i32
    %c0_i32_1 = arith.constant 0 : i32
    return %c0_i32, %c0_i32_0 : i32, i32
  }
  func.func @transform_2(%arg0: i32) -> (i32, i32) {
    %c0_i32 = arith.constant 0 : i32
    %c0_i32_0 = arith.constant 0 : i32
    %c0_i32_1 = arith.constant 0 : i32
    return %c0_i32, %c0_i32_0 : i32, i32
  }
  func.func @transform_3(%arg0: i32) -> (i32, i32) {
    %c0_i32 = arith.constant 0 : i32
    %c0_i32_0 = arith.constant 0 : i32
    %c0_i32_1 = arith.constant 0 : i32
    return %c0_i32, %c0_i32_0 : i32, i32
  }
  func.func @transform_4(%arg0: i32) -> (i32, i32) {
    %c0_i32 = arith.constant 0 : i32
    %c0_i32_0 = arith.constant 0 : i32
    %c0_i32_1 = arith.constant 0 : i32
    return %c0_i32, %c0_i32_0 : i32, i32
  }
  func.func @transform_5(%arg0: i32) -> (i32, i32) {
    %c0_i32 = arith.constant 0 : i32
    %c0_i32_0 = arith.constant 0 : i32
    %c0_i32_1 = arith.constant 0 : i32
    return %c0_i32, %c0_i32_0 : i32, i32
  }
  func.func @transform_6(%arg0: i32) -> (i32, i32, i32) {
    %c0_i32 = arith.constant 0 : i32
    %c0_i32_0 = arith.constant 0 : i32
    %c0_i32_1 = arith.constant 0 : i32
    return %arg0, %c0_i32, %c0_i32_0 : i32, i32, i32
  }
}

</mosaic_0001>

<llo_original>
// kernel: encoder_block.1
$region0: #{encoder_block.1}
  #allocation0 [shape = 'u32[]', space=smem, size = 0x4, offset = 0x4, fixed_abs, tag = 'smem constant byte address 0x4 - core index']
  #allocation1 [shape = 'u32[144,128]{1,0:T(1,128)}', space=vmem, size = 0x12000, scoped, tag = 'internal scratch']
  #allocation2 [shape = 'bf16[16,640]{1,0:T(16,128)(2,1)}', space=vmem, size = 0x5000, scoped, tag = 'scratch operand']
  %s0 = inlined_call_operand.vmem [shape: bf16[2,9,384], index: 0, kind: input, shape index: {}]
  %s1 = inlined_call_operand.vmem [shape: bf16[16,9], index: 1, kind: input, shape index: {}]
  %s2 = inlined_call_operand.vmem [shape: f32[16,1], index: 2, kind: input, shape index: {}]
  %s3 = inlined_call_operand.vmem [shape: bf16[32,144], index: 3, kind: input, shape index: {}]
  %s4 = inlined_call_operand.vmem [shape: f32[32,1], index: 4, kind: input, shape index: {}]
  %s5 = inlined_call_operand.vmem [shape: f32[1,384], index: 5, kind: input, shape index: {}]
  %s6 = inlined_call_operand.vmem [shape: f32[2,32,384], index: 6, kind: output, shape index: {}]
  %s7 = sld [smem:[#allocation0]]
  $region57: #{encoder_block.1} parent=0
    _
  %s9 = ssub.s32 1, %s7
  %s10 = scalar_select 0, %s9, %s7
  loop: start=0, step=1, limit=4
  $region2: #{encoder_block.1} parent=0 // loop_pre_header
    _
  $region3: #{encoder_block.1} parent=0 // loop_header
    %s12 = sphi 0, %s16
    %p13 = scmp.ge.s32.totalorder %s12, 4
    %s22 = sphi 0, %s24
    %s25 = sphi 0, %s22
    %s26 = sphi 0, %s25
    %s42 = sphi 0, %s26
    %s46 = sphi 0, %s46
    %s48 = sphi 0, %s46
    %s49 = sphi 0, %s48
    %s63 = sphi 0, %s49
    %s67 = sphi 0, %s67
    %s69 = sphi 0, %s67
    %s70 = sphi 0, %s69
    %s84 = sphi 0, %s70
    %s88 = sphi 0, %s88
    %s90 = sphi 0, %s88
    %s91 = sphi 0, %s90
    %s105 = sphi 0, %s91
    %s109 = sphi 0, %s109
    %s111 = sphi 0, %s109
    %s112 = sphi 0, %s111
    %s126 = sphi 0, %s112
    %s130 = sphi 0, %s130
    %s132 = sphi 0, %s130
    %s133 = sphi 0, %s132
    %s147 = sphi 0, %s133
    %s153 = sphi 0, %s155
    %s156 = sphi 0, %s153
    %s157 = sphi 0, %s156
    %s173 = sphi 0, %s157
  $region4: #{encoder_block.1} parent=0 // loop_header_branch
    %15 = sbr.rel (%p13) target = $region8
  $region5: #{encoder_block.1} parent=0 // loop_body
    %s17 = ssub.s32 %s12, 1
    %s18 = ssub.s32 %s12, 2
    %s19 = sadd.s32 %s12, 1
    %s20 = ssub.s32 %s12, %s19
    %p21 = scmp.eq.s32.totalorder %s20, 0
    %s23 = sadd.s32 %s22, 1
    %s24 = scalar_select %p21, %s22, %s23
    %p27 = pneg %p21
    %p28 = scmp.eq.s32.totalorder %s12, 1
    %p29 = por %p27, %p28
    %p30 = scmp.ne.s32.totalorder %s22, %s25
    %p31 = scmp.eq.s32.totalorder %s12, 0
    %p32 = por %p30, %p31
    %p33 = scmp.ne.s32.totalorder %s22, %s25
    %p34 = scmp.eq.s32.totalorder %s17, 1
    %p35 = por %p33, %p34
    %p36 = scmp.ne.s32.totalorder %s25, %s26
    %p37 = scmp.eq.s32.totalorder %s17, 0
    %p38 = por %p36, %p37
    %p39 = scmp.ne.s32.totalorder %s25, %s26
    %p40 = scmp.eq.s32.totalorder %s18, 1
    %p41 = por %p39, %p40
    %p43 = scmp.ne.s32.totalorder %s26, %s42
    %p44 = scmp.eq.s32.totalorder %s18, 0
    %p45 = por %p43, %p44
    %s47 = sadd.s32 %s46, 1
    %p50 = scmp.eq.s32.totalorder %s12, 1
    %p51 = scmp.ne.s32.totalorder %s46, %s48
    %p52 = scmp.eq.s32.totalorder %s12, 0
    %p53 = por %p51, %p52
    %p54 = scmp.ne.s32.totalorder %s46, %s48
    %p55 = scmp.eq.s32.totalorder %s17, 1
    %p56 = por %p54, %p55
    %p57 = scmp.ne.s32.totalorder %s48, %s49
    %p58 = scmp.eq.s32.totalorder %s17, 0
    %p59 = por %p57, %p58
    %p60 = scmp.ne.s32.totalorder %s48, %s49
    %p61 = scmp.eq.s32.totalorder %s18, 1
    %p62 = por %p60, %p61
    %p64 = scmp.ne.s32.totalorder %s49, %s63
    %p65 = scmp.eq.s32.totalorder %s18, 0
    %p66 = por %p64, %p65
    %s68 = sadd.s32 %s67, 1
    %p71 = scmp.eq.s32.totalorder %s12, 1
    %p72 = scmp.ne.s32.totalorder %s67, %s69
    %p73 = scmp.eq.s32.totalorder %s12, 0
    %p74 = por %p72, %p73
    %p75 = scmp.ne.s32.totalorder %s67, %s69
    %p76 = scmp.eq.s32.totalorder %s17, 1
    %p77 = por %p75, %p76
    %p78 = scmp.ne.s32.totalorder %s69, %s70
    %p79 = scmp.eq.s32.totalorder %s17, 0
    %p80 = por %p78, %p79
    %p81 = scmp.ne.s32.totalorder %s69, %s70
    %p82 = scmp.eq.s32.totalorder %s18, 1
    %p83 = por %p81, %p82
    %p85 = scmp.ne.s32.totalorder %s70, %s84
    %p86 = scmp.eq.s32.totalorder %s18, 0
    %p87 = por %p85, %p86
    %s89 = sadd.s32 %s88, 1
    %p92 = scmp.eq.s32.totalorder %s12, 1
    %p93 = scmp.ne.s32.totalorder %s88, %s90
    %p94 = scmp.eq.s32.totalorder %s12, 0
    %p95 = por %p93, %p94
    %p96 = scmp.ne.s32.totalorder %s88, %s90
    %p97 = scmp.eq.s32.totalorder %s17, 1
    %p98 = por %p96, %p97
    %p99 = scmp.ne.s32.totalorder %s90, %s91
    %p100 = scmp.eq.s32.totalorder %s17, 0
    %p101 = por %p99, %p100
    %p102 = scmp.ne.s32.totalorder %s90, %s91
    %p103 = scmp.eq.s32.totalorder %s18, 1
    %p104 = por %p102, %p103
    %p106 = scmp.ne.s32.totalorder %s91, %s105
    %p107 = scmp.eq.s32.totalorder %s18, 0
    %p108 = por %p106, %p107
    %s110 = sadd.s32 %s109, 1
    %p113 = scmp.eq.s32.totalorder %s12, 1
    %p114 = scmp.ne.s32.totalorder %s109, %s111
    %p115 = scmp.eq.s32.totalorder %s12, 0
    %p116 = por %p114, %p115
    %p117 = scmp.ne.s32.totalorder %s109, %s111
    %p118 = scmp.eq.s32.totalorder %s17, 1
    %p119 = por %p117, %p118
    %p120 = scmp.ne.s32.totalorder %s111, %s112
    %p121 = scmp.eq.s32.totalorder %s17, 0
    %p122 = por %p120, %p121
    %p123 = scmp.ne.s32.totalorder %s111, %s112
    %p124 = scmp.eq.s32.totalorder %s18, 1
    %p125 = por %p123, %p124
    %p127 = scmp.ne.s32.totalorder %s112, %s126
    %p128 = scmp.eq.s32.totalorder %s18, 0
    %p129 = por %p127, %p128
    %s131 = sadd.s32 %s130, 1
    %p134 = scmp.eq.s32.totalorder %s12, 1
    %p135 = scmp.ne.s32.totalorder %s130, %s132
    %p136 = scmp.eq.s32.totalorder %s12, 0
    %p137 = por %p135, %p136
    %p138 = scmp.ne.s32.totalorder %s130, %s132
    %p139 = scmp.eq.s32.totalorder %s17, 1
    %p140 = por %p138, %p139
    %p141 = scmp.ne.s32.totalorder %s132, %s133
    %p142 = scmp.eq.s32.totalorder %s17, 0
    %p143 = por %p141, %p142
    %p144 = scmp.ne.s32.totalorder %s132, %s133
    %p145 = scmp.eq.s32.totalorder %s18, 1
    %p146 = por %p144, %p145
    %p148 = scmp.ne.s32.totalorder %s133, %s147
    %p149 = scmp.eq.s32.totalorder %s18, 0
    %p150 = por %p148, %p149
    %s151 = ssub.s32 %s12, %s19
    %p152 = scmp.eq.s32.totalorder %s151, 0
    %s154 = sadd.s32 %s153, 1
    %s155 = scalar_select %p152, %s153, %s154
    %p158 = pneg %p152
    %p159 = scmp.eq.s32.totalorder %s12, 1
    %p160 = por %p158, %p159
    %p161 = scmp.ne.s32.totalorder %s153, %s156
    %p162 = scmp.eq.s32.totalorder %s12, 0
    %p163 = por %p161, %p162
    %p164 = scmp.ne.s32.totalorder %s153, %s156
    %p165 = scmp.eq.s32.totalorder %s17, 1
    %p166 = por %p164, %p165
    %p167 = scmp.ne.s32.totalorder %s156, %s157
    %p168 = scmp.eq.s32.totalorder %s17, 0
    %p169 = por %p167, %p168
    %p170 = scmp.ne.s32.totalorder %s156, %s157
    %p171 = scmp.eq.s32.totalorder %s18, 1
    %p172 = por %p170, %p171
    %p174 = scmp.ne.s32.totalorder %s157, %s173
    %p175 = scmp.eq.s32.totalorder %s18, 0
    %p176 = por %p174, %p175
    %p177 = scmp.le.s32.totalorder 1, %s12
    %p178 = scmp.lt.s32.totalorder %s12, 3
    %p179 = pnand %p177, %p178
    %p180 = pneg %p179
    // Predicated region
    $region9: #{encoder_block.1} parent=5 // pred_check
      _
    $region10: #{encoder_block.1} parent=5 // pred_check_branch
      %182 = sbr.rel (%p179) target = $region12
    $region11: #{encoder_block.1} parent=5 // pred_region
      %s183 = ssub.s32 %s12, 1
      // Predicated region
      $region13: #{encoder_block.1} parent=11 // pred_check
        %p184 = pneg %p59
      $region14: #{encoder_block.1} parent=11 // pred_check_branch
        %186 = sbr.rel (%p184) target = $region16
      $region15: #{encoder_block.1} parent=11 // pred_region
        _
      $region16: #{encoder_block.1} parent=11 // pred_fallthru
        _
      // Predicated region
      $region17: #{encoder_block.1} parent=11 // pred_check
        %p187 = pneg %p80
      $region18: #{encoder_block.1} parent=11 // pred_check_branch
        %189 = sbr.rel (%p187) target = $region20
      $region19: #{encoder_block.1} parent=11 // pred_region
        _
      $region20: #{encoder_block.1} parent=11 // pred_fallthru
        _
      // Predicated region
      $region21: #{encoder_block.1} parent=11 // pred_check
        %p190 = pneg %p101
      $region22: #{encoder_block.1} parent=11 // pred_check_branch
        %192 = sbr.rel (%p190) target = $region24
      $region23: #{encoder_block.1} parent=11 // pred_region
        _
      $region24: #{encoder_block.1} parent=11 // pred_fallthru
        _
      // Predicated region
      $region25: #{encoder_block.1} parent=11 // pred_check
        %p193 = pneg %p122
      $region26: #{encoder_block.1} parent=11 // pred_check_branch
        %195 = sbr.rel (%p193) target = $region28
      $region27: #{encoder_block.1} parent=11 // pred_region
        _
      $region28: #{encoder_block.1} parent=11 // pred_fallthru
        _
      // Predicated region
      $region29: #{encoder_block.1} parent=11 // pred_check
        %p196 = pneg %p143
      $region30: #{encoder_block.1} parent=11 // pred_check_branch
        %198 = sbr.rel (%p196) target = $region32
      $region31: #{encoder_block.1} parent=11 // pred_region
        _
      $region32: #{encoder_block.1} parent=11 // pred_fallthru
        _
    $region12: #{encoder_block.1} parent=5 // pred_fallthru
      _
    %p199 = scmp.lt.s32.totalorder %s12, 2
    // Predicated region
    $region33: #{encoder_block.1} parent=5 // pred_check
      %p200 = pneg %p199
    $region34: #{encoder_block.1} parent=5 // pred_check_branch
      %202 = sbr.rel (%p200) target = $region36
    $region35: #{encoder_block.1} parent=5 // pred_region
      // Predicated region
      $region37: #{encoder_block.1} parent=35 // pred_check
        %p203 = pneg %p32
      $region38: #{encoder_block.1} parent=35 // pred_check_branch
        %205 = sbr.rel (%p203) target = $region40
      $region39: #{encoder_block.1} parent=35 // pred_region
        %p206 = scmp.lt.s32.totalorder %s12, 1
        %s207 = scalar_select %p206, %s12, 1
        %s208 = smul.addr %s207, 6
        %s209 = smul.addr %s208, 4
        %s210 = scalar_lea.vmem %s0, %s209
      $region40: #{encoder_block.1} parent=35 // pred_fallthru
        _
    $region36: #{encoder_block.1} parent=5 // pred_fallthru
      _
    %p211 = scmp.le.s32.totalorder 1, %s12
    %p212 = scmp.lt.s32.totalorder %s12, 3
    %p213 = pnand %p211, %p212
    %p214 = pneg %p213
    // Predicated region
    $region41: #{encoder_block.1} parent=5 // pred_check
      _
    $region42: #{encoder_block.1} parent=5 // pred_check_branch
      %216 = sbr.rel (%p213) target = $region44
    $region43: #{encoder_block.1} parent=5 // pred_region
      %s217 = ssub.s32 %s12, 1
      %p218 = scmp.lt.s32.totalorder %s17, 1
      %s219 = scalar_select %p218, %s17, 1
      %s220 = smul.addr %s219, 6
      %s221 = smul.addr %s220, 4
      %s222 = scalar_lea.vmem %s0, %s221
      %p223 = pneg %p38
      %p224 = pneg %p35
      %p225 = pneg %p59
      %p226 = pneg %p56
      %p227 = pneg %p80
      %p228 = pneg %p77
      %p229 = pneg %p101
      %p230 = pneg %p98
      %p231 = pneg %p122
      %p232 = pneg %p119
      %p233 = pneg %p143
      %p234 = pneg %p140
      %p235 = pneg %p169
      %p236 = pneg %p166
      %p237 = scmp.lt.s32.totalorder %s17, 1
      %s238 = scalar_select %p237, %s17, 1
      %s239 = smul.addr %s238, 12
      %s240 = smul.addr %s239, 8
      %s241 = scalar_lea.vmem %s6, %s240
      %p242 = scmp.lt.s32.totalorder %s17, 1
      %s243 = scalar_select %p242, %s17, 1
      %s244 = smul.addr %s243, 6
      %s245 = smul.addr %s244, 4
      %s246 = scalar_lea.vmem %s0, %s245
      %p247 = scmp.lt.s32.totalorder %s17, 1
      %s248 = scalar_select %p247, %s17, 1
      %s249 = smul.addr %s248, 12
      %s250 = smul.addr %s249, 8
      %s251 = scalar_lea.vmem %s6, %s250
      %253 = vst [vmem:[#allocation2] sm:$0xff] 0
      %254 = vst [vmem:[#allocation2 + $0x20] sm:$0xff] 0
      %v255 = vld [vmem:[%s1] sm:$0xf]
      %v256 = vld [vmem:[%s1 + $0x4] sm:$0xf]
      %v257 = vld [vmem:[%s246] sm:$0xff]
      %v258 = vld [vmem:[%s246 + $0x8] sm:$0xf]
      %v259 = vld [vmem:[%s246 + $0xc] sm:$0x11]
      %v260 = vld [vmem:[%s246 + $0x14] sm:$0x1]
      %v261 = vld [vmem:[%s5] sm:$0x7]
      %v262 = vld [vmem:[%s2] sm:$0xff]
      %v263 = vld [vmem:[%s2 + $0x8] sm:$0xff]
      %265 = vset.pattern.permute.xlu0 0
      %266 = vperm.xlu0 %265, %v262
      %v267 = vpop.permute.xlu0 %266
      %270 = vset.pattern.permute.xlu0 0
      %271 = vperm.xlu0 %270, %v263
      %v272 = vpop.permute.xlu0 %271
      %v276 = vunpack.c.l.b16 %v255
      %v277 = vunpack.c.l.b16 %v256
      %v278 = vpack.c.b16 %v277, %v276
      %v283 = vunpack.c.l.b16 %v257
      %v284 = vunpack.c.h.b16 %v257
      %v285 = vunpack.c.l.b16 %v258
      %v286 = vunpack.c.l.b16 %v259
      %v287 = vunpack.c.h.b16 %v259
      %v288 = vunpack.c.l.b16 %v260
      %v289 = vpack.c.b16 %v286, %v283
      %v290 = vpack.c.b16 %v287, %v284
      %v291 = vpack.c.b16 %v288, %v285
      %vm292 = vcmask 72704
      %v294 = vsel %vm292, %v278, 0
      %vm296 = vcmask 1043456
      %vm297 = vcmask 1044480
      %v298 = vsel %vm296, 4294967295, 65535
      %v299 = vsel %vm297, %v298, 0
      %v301 = vand.u32 %v289, %v299
      %v304 = vand.u32 %v290, %v299
      %v307 = vand.u32 %v291, %v299
      %309 = vmatprep.subr.bf16.mxu0 %v304
      %310 = vmatpush1.bf16.msra.mxu0 %v301
      %311 = vmatprep.subr.bf16.mxu0 0
      %312 = vmatpush1.bf16.msra.mxu0 0
      %313 = vmatprep.subr.bf16.mxu0 0
      %314 = vmatpush1.bf16.msra.mxu0 0
      %315 = vmatprep.subr.bf16.mxu0 0
      %316 = vmatpush1.bf16.msra.mxu0 0
      %317 = vmatprep.subr.bf16.mxu0 0
      %318 = vmatpush1.bf16.msra.mxu0 0
      %319 = vmatprep.subr.bf16.mxu0 0
      %320 = vmatpush1.bf16.msra.mxu0 0
      %321 = vmatprep.subr.bf16.mxu0 0
      %322 = vmatpush1.bf16.msra.mxu0 0
      %323 = vmatprep.subr.bf16.mxu0 0
      %324 = vmatpush1.bf16.msra.mxu0 0
      %325 = vmatprep.subr.bf16.mxu0 0
      %326 = vmatpush1.bf16.msra.mxu0 0
      %327 = vmatprep.subr.bf16.mxu0 0
      %328 = vmatpush1.bf16.msra.mxu0 0
      %329 = vmatprep.subr.bf16.mxu0 0
      %330 = vmatpush1.bf16.msra.mxu0 0
      %331 = vmatprep.subr.bf16.mxu0 0
      %332 = vmatpush1.bf16.msra.mxu0 0
      %333 = vmatprep.subr.bf16.mxu0 0
      %334 = vmatpush1.bf16.msra.mxu0 0
      %335 = vmatprep.subr.bf16.mxu0 0
      %336 = vmatpush1.bf16.msra.mxu0 0
      %337 = vmatprep.subr.bf16.mxu0 0
      %338 = vmatpush1.bf16.msra.mxu0 0
      %339 = vmatprep.subr.bf16.mxu0 0
      %340 = vmatpush1.bf16.msra.mxu0 0
      %341 = vmatprep.mubr.bf16.mxu0 0
      %342 = vmatmul.mubr.bf16.gmra.mrb[0].mxu0 %v294
      %v343 = vpop.f32.mrb[0].mxu0
      %v344 = vadd.f32 %v267, %v343
      %v345 = vpop.f32.mrb[0].mxu0
      %v346 = vadd.f32 %v267, %v345
      %v347 = vpop.f32.mrb[0].mxu0
      %v348 = vadd.f32 %v272, %v347
      %v349 = vpop.f32.mrb[0].mxu0
      %v350 = vadd.f32 %v272, %v349
      %351 = vdwg.mxu0
      %352 = vmatprep.subr.bf16.mxu0 0
      %353 = vmatpush1.bf16.msra.mxu0 %v307
      %354 = vmatprep.subr.bf16.mxu0 0
      %355 = vmatpush1.bf16.msra.mxu0 0
      %356 = vmatprep.subr.bf16.mxu0 0
      %357 = vmatpush1.bf16.msra.mxu0 0
      %358 = vmatprep.subr.bf16.mxu0 0
      %359 = vmatpush1.bf16.msra.mxu0 0
      %360 = vmatprep.subr.bf16.mxu0 0
      %361 = vmatpush1.bf16.msra.mxu0 0
      %362 = vmatprep.subr.bf16.mxu0 0
      %363 = vmatpush1.bf16.msra.mxu0 0
      %364 = vmatprep.subr.bf16.mxu0 0
      %365 = vmatpush1.bf16.msra.mxu0 0
      %366 = vmatprep.subr.bf16.mxu0 0
      %367 = vmatpush1.bf16.msra.mxu0 0
      %368 = vmatprep.subr.bf16.mxu0 0
      %369 = vmatpush1.bf16.msra.mxu0 0
      %370 = vmatprep.subr.bf16.mxu0 0
      %371 = vmatpush1.bf16.msra.mxu0 0
      %372 = vmatprep.subr.bf16.mxu0 0
      %373 = vmatpush1.bf16.msra.mxu0 0
      %374 = vmatprep.subr.bf16.mxu0 0
      %375 = vmatpush1.bf16.msra.mxu0 0
      %376 = vmatprep.subr.bf16.mxu0 0
      %377 = vmatpush1.bf16.msra.mxu0 0
      %378 = vmatprep.subr.bf16.mxu0 0
      %379 = vmatpush1.bf16.msra.mxu0 0
      %380 = vmatprep.subr.bf16.mxu0 0
      %381 = vmatpush1.bf16.msra.mxu0 0
      %382 = vmatprep.subr.bf16.mxu0 0
      %383 = vmatpush1.bf16.msra.mxu0 0
      %384 = vmatprep.mubr.bf16.mxu0 0
      %385 = vmatmul.mubr.bf16.gmra.mrb[0].mxu0 %v294
      %v386 = vpop.f32.mrb[0].mxu0
      %v387 = vadd.f32 %v267, %v386
      %v388 = vpop.f32.mrb[0].mxu0
      %v389 = vpop.f32.mrb[0].mxu0
      %v390 = vadd.f32 %v272, %v389
      %v391 = vpop.f32.mrb[0].mxu0
      %392 = vdwg.mxu0
      %v393 = vmax.f32 %v344, 0.0
      %v394 = vmax.f32 %v346, 0.0
      %v395 = vmax.f32 %v387, 0.0
      %v396 = vmax.f32 %v348, 0.0
      %v397 = vmax.f32 %v350, 0.0
      %v398 = vmax.f32 %v390, 0.0
      %v400 = vlaneseq
      %v401 = vshrl.u32 %v400, 7
      %v402 = vsub.s32 0, %v401
      %v403 = vrot.slane %v261, %v402
      %v404 = vlaneseq
      %v405 = vshrl.u32 %v404, 7
      %v406 = vsub.s32 1, %v405
      %v407 = vrot.slane %v261, %v406
      %v408 = vlaneseq
      %v409 = vshrl.u32 %v408, 7
      %v410 = vsub.s32 2, %v409
      %v411 = vrot.slane %v261, %v410
      %v415 = vmul.f32 %v393, %v403
      %v416 = vmul.f32 %v394, %v407
      %v417 = vmul.f32 %v395, %v411
      %v418 = vmul.f32 %v396, %v403
      %v419 = vmul.f32 %v397, %v407
      %v420 = vmul.f32 %v398, %v411
      %v421 = vpack.c.bf16 %v418, %v415
      %v422 = vpack.c.bf16 %v419, %v416
      %v423 = vpack.c.bf16 %v420, %v417
      %424 = vst [vmem:[#allocation2 + $0x8] sm:$0xff] %v421
      %425 = vst [vmem:[#allocation2 + $0x10] sm:$0xff] %v422
      %426 = vst [vmem:[#allocation2 + $0x18] sm:$0xff] %v423
      %v427 = vld [vmem:[#allocation2] sm:$0xff]
      %v428 = vld [vmem:[#allocation2 + $0x8] sm:$0xff]
      %v429 = vld [vmem:[#allocation2 + $0x10] sm:$0xff]
      %v430 = vld [vmem:[#allocation2 + $0x18] sm:$0xff]
      %v431 = vld [vmem:[#allocation2 + $0x8] sm:$0xff]
      %v432 = vld [vmem:[#allocation2 + $0x10] sm:$0xff]
      %v433 = vld [vmem:[#allocation2 + $0x18] sm:$0xff]
      %v434 = vld [vmem:[#allocation2 + $0x20] sm:$0xff]
      %439 = vrot.lane.b32.xlu0 %v427, 127
      %v440 = vpop.permute.xlu0 %439
      %441 = vrot.lane.b32.xlu0 %v428, 127
      %v442 = vpop.permute.xlu0 %441
      %443 = vrot.lane.b32.xlu0 %v429, 127
      %v444 = vpop.permute.xlu0 %443
      %445 = vrot.lane.b32.xlu0 %v430, 127
      %v446 = vpop.permute.xlu0 %445
      %vm447 = vcmask 1039360
      %v448 = vsel %vm447, %v440, %v442
      %v449 = vsel %vm447, %v442, %v444
      %v450 = vsel %vm447, %v444, %v446
      %451 = vrot.lane.b32.xlu0 %v427, 126
      %v452 = vpop.permute.xlu0 %451
      %453 = vrot.lane.b32.xlu0 %v428, 126
      %v454 = vpop.permute.xlu0 %453
      %455 = vrot.lane.b32.xlu0 %v429, 126
      %v456 = vpop.permute.xlu0 %455
      %457 = vrot.lane.b32.xlu0 %v430, 126
      %v458 = vpop.permute.xlu0 %457
      %vm459 = vcmask 1031168
      %v460 = vsel %vm459, %v452, %v454
      %v461 = vsel %vm459, %v454, %v456
      %v462 = vsel %vm459, %v456, %v458
      %463 = vrot.lane.b32.xlu0 %v427, 110
      %v464 = vpop.permute.xlu0 %463
      %465 = vrot.lane.b32.xlu0 %v428, 110
      %v466 = vpop.permute.xlu0 %465
      %467 = vrot.lane.b32.xlu0 %v429, 110
      %v468 = vpop.permute.xlu0 %467
      %469 = vrot.lane.b32.xlu0 %v430, 110
      %v470 = vpop.permute.xlu0 %469
      %vm471 = vcmask 900096
      %v472 = vsel %vm471, %v464, %v466
      %v473 = vsel %vm471, %v466, %v468
      %v474 = vsel %vm471, %v468, %v470
      %475 = vrot.lane.b32.xlu0 %v428, 109
      %v476 = vpop.permute.xlu0 %475
      %477 = vrot.lane.b32.xlu0 %v429, 109
      %v478 = vpop.permute.xlu0 %477
      %479 = vrot.lane.b32.xlu0 %v430, 109
      %v480 = vpop.permute.xlu0 %479
      %vm481 = vcmask 891904
      %v482 = vsel %vm481, %v476, %v478
      %v483 = vsel %vm481, %v478, %v480
      %488 = vrot.lane.b32.xlu0 %v431, 108
      %v489 = vpop.permute.xlu0 %488
      %490 = vrot.lane.b32.xlu0 %v432, 108
      %v491 = vpop.permute.xlu0 %490
      %492 = vrot.lane.b32.xlu0 %v433, 108
      %v493 = vpop.permute.xlu0 %492
      %494 = vrot.lane.b32.xlu0 %v434, 108
      %v495 = vpop.permute.xlu0 %494
      %vm496 = vcmask 883712
      %v497 = vsel %vm496, %v489, %v491
      %v498 = vsel %vm496, %v491, %v493
      %v499 = vsel %vm496, %v493, %v495
      %500 = vrot.lane.b32.xlu0 %v431, 92
      %v501 = vpop.permute.xlu0 %500
      %502 = vrot.lane.b32.xlu0 %v432, 92
      %v503 = vpop.permute.xlu0 %502
      %504 = vrot.lane.b32.xlu0 %v433, 92
      %v505 = vpop.permute.xlu0 %504
      %506 = vrot.lane.b32.xlu0 %v434, 92
      %v507 = vpop.permute.xlu0 %506
      %vm508 = vcmask 752640
      %v509 = vsel %vm508, %v501, %v503
      %v510 = vsel %vm508, %v503, %v505
      %v511 = vsel %vm508, %v505, %v507
      %512 = vrot.lane.b32.xlu0 %v431, 91
      %v513 = vpop.permute.xlu0 %512
      %514 = vrot.lane.b32.xlu0 %v432, 91
      %v515 = vpop.permute.xlu0 %514
      %516 = vrot.lane.b32.xlu0 %v433, 91
      %v517 = vpop.permute.xlu0 %516
      %518 = vrot.lane.b32.xlu0 %v434, 91
      %v519 = vpop.permute.xlu0 %518
      %vm520 = vcmask 744448
      %v521 = vsel %vm520, %v513, %v515
      %v522 = vsel %vm520, %v515, %v517
      %v523 = vsel %vm520, %v517, %v519
      %524 = vrot.lane.b32.xlu0 %v431, 90
      %v525 = vpop.permute.xlu0 %524
      %526 = vrot.lane.b32.xlu0 %v432, 90
      %v527 = vpop.permute.xlu0 %526
      %528 = vrot.lane.b32.xlu0 %v433, 90
      %v529 = vpop.permute.xlu0 %528
      %530 = vrot.lane.b32.xlu0 %v434, 90
      %v531 = vpop.permute.xlu0 %530
      %vm532 = vcmask 736256
      %v533 = vsel %vm532, %v525, %v527
      %v534 = vsel %vm532, %v527, %v529
      %v535 = vsel %vm532, %v529, %v531
      %v536 = vld [vmem:[%s3] sm:$0xff]
      %v537 = vld [vmem:[%s3 + $0x8] sm:$0xff]
      %v538 = vld [vmem:[%s3 + $0x10] sm:$0xff]
      %v539 = vld [vmem:[%s3 + $0x18] sm:$0xff]
      %v540 = vld [vmem:[%s4] sm:$0xff]
      %v541 = vld [vmem:[%s4 + $0x8] sm:$0xff]
      %v542 = vld [vmem:[%s4 + $0x10] sm:$0xff]
      %v543 = vld [vmem:[%s4 + $0x18] sm:$0xff]
      %545 = vset.pattern.permute.xlu0 0
      %546 = vperm.xlu0 %545, %v540
      %v547 = vpop.permute.xlu0 %546
      %550 = vset.pattern.permute.xlu0 0
      %551 = vperm.xlu0 %550, %v541
      %v552 = vpop.permute.xlu0 %551
      %555 = vset.pattern.permute.xlu0 0
      %556 = vperm.xlu0 %555, %v542
      %v557 = vpop.permute.xlu0 %556
      %560 = vset.pattern.permute.xlu0 0
      %561 = vperm.xlu0 %560, %v543
      %v562 = vpop.permute.xlu0 %561
      %v568 = vunpack.c.l.b16 %v536
      %v569 = vunpack.c.h.b16 %v536
      %v570 = vunpack.c.l.b16 %v537
      %v571 = vunpack.c.h.b16 %v537
      %v572 = vunpack.c.l.b16 %v538
      %v573 = vunpack.c.h.b16 %v538
      %v574 = vunpack.c.l.b16 %v539
      %v575 = vunpack.c.h.b16 %v539
      %v576 = vpack.c.b16 %v570, %v568
      %v577 = vpack.c.b16 %v571, %v569
      %v578 = vpack.c.b16 %v574, %v572
      %v579 = vpack.c.b16 %v575, %v573
      %582 = vrot.lane.b32.xlu0 %v427, 19
      %v583 = vpop.permute.xlu0 %582
      %584 = vrot.lane.b32.xlu0 %v428, 19
      %v585 = vpop.permute.xlu0 %584
      %586 = vrot.lane.b32.xlu0 %v429, 19
      %v587 = vpop.permute.xlu0 %586
      %588 = vrot.lane.b32.xlu0 %v430, 19
      %v589 = vpop.permute.xlu0 %588
      %590 = vrot.lane.b32.xlu0 %v448, 19
      %v591 = vpop.permute.xlu0 %590
      %592 = vrot.lane.b32.xlu0 %v449, 19
      %v593 = vpop.permute.xlu0 %592
      %594 = vrot.lane.b32.xlu0 %v450, 19
      %v595 = vpop.permute.xlu0 %594
      %596 = vrot.lane.b32.xlu0 %v446, 19
      %v597 = vpop.permute.xlu0 %596
      %598 = vrot.lane.b32.xlu0 %v460, 19
      %v599 = vpop.permute.xlu0 %598
      %600 = vrot.lane.b32.xlu0 %v461, 19
      %v601 = vpop.permute.xlu0 %600
      %602 = vrot.lane.b32.xlu0 %v462, 19
      %v603 = vpop.permute.xlu0 %602
      %604 = vrot.lane.b32.xlu0 %v458, 19
      %v605 = vpop.permute.xlu0 %604
      %606 = vrot.lane.b32.xlu0 %v472, 19
      %v607 = vpop.permute.xlu0 %606
      %608 = vrot.lane.b32.xlu0 %v473, 19
      %v609 = vpop.permute.xlu0 %608
      %610 = vrot.lane.b32.xlu0 %v474, 19
      %v611 = vpop.permute.xlu0 %610
      %612 = vrot.lane.b32.xlu0 %v470, 19
      %v613 = vpop.permute.xlu0 %612
      %614 = vrot.lane.b32.xlu0 %v476, 19
      %v615 = vpop.permute.xlu0 %614
      %616 = vrot.lane.b32.xlu0 %v482, 19
      %v617 = vpop.permute.xlu0 %616
      %618 = vrot.lane.b32.xlu0 %v483, 19
      %v619 = vpop.permute.xlu0 %618
      %620 = vrot.lane.b32.xlu0 %v480, 19
      %v621 = vpop.permute.xlu0 %620
      %622 = vrot.lane.b32.xlu0 %v489, 19
      %v623 = vpop.permute.xlu0 %622
      %624 = vrot.lane.b32.xlu0 %v497, 19
      %v625 = vpop.permute.xlu0 %624
      %626 = vrot.lane.b32.xlu0 %v498, 19
      %v627 = vpop.permute.xlu0 %626
      %628 = vrot.lane.b32.xlu0 %v499, 19
      %v629 = vpop.permute.xlu0 %628
      %630 = vrot.lane.b32.xlu0 %v501, 19
      %v631 = vpop.permute.xlu0 %630
      %632 = vrot.lane.b32.xlu0 %v509, 19
      %v633 = vpop.permute.xlu0 %632
      %634 = vrot.lane.b32.xlu0 %v510, 19
      %v635 = vpop.permute.xlu0 %634
      %636 = vrot.lane.b32.xlu0 %v511, 19
      %v637 = vpop.permute.xlu0 %636
      %638 = vrot.lane.b32.xlu0 %v513, 19
      %v639 = vpop.permute.xlu0 %638
      %640 = vrot.lane.b32.xlu0 %v521, 19
      %v641 = vpop.permute.xlu0 %640
      %642 = vrot.lane.b32.xlu0 %v522, 19
      %v643 = vpop.permute.xlu0 %642
      %644 = vrot.lane.b32.xlu0 %v523, 19
      %v645 = vpop.permute.xlu0 %644
      %646 = vrot.lane.b32.xlu0 %v525, 19
      %v647 = vpop.permute.xlu0 %646
      %648 = vrot.lane.b32.xlu0 %v533, 19
      %v649 = vpop.permute.xlu0 %648
      %650 = vrot.lane.b32.xlu0 %v534, 19
      %v651 = vpop.permute.xlu0 %650
      %652 = vrot.lane.b32.xlu0 %v535, 19
      %v653 = vpop.permute.xlu0 %652
      %vm654 = vcmask 154624
      %v655 = vsel %vm654, %v583, %v585
      %v656 = vsel %vm654, %v585, %v587
      %v657 = vsel %vm654, %v587, %v589
      %v658 = vsel %vm654, %v591, %v593
      %v659 = vsel %vm654, %v593, %v595
      %v660 = vsel %vm654, %v595, %v597
      %v661 = vsel %vm654, %v599, %v601
      %v662 = vsel %vm654, %v601, %v603
      %v663 = vsel %vm654, %v603, %v605
      %v664 = vsel %vm654, %v607, %v609
      %v665 = vsel %vm654, %v609, %v611
      %v666 = vsel %vm654, %v611, %v613
      %v667 = vsel %vm654, %v615, %v617
      %v668 = vsel %vm654, %v617, %v619
      %v669 = vsel %vm654, %v619, %v621
      %v670 = vsel %vm654, %v623, %v625
      %v671 = vsel %vm654, %v625, %v627
      %v672 = vsel %vm654, %v627, %v629
      %v673 = vsel %vm654, %v631, %v633
      %v674 = vsel %vm654, %v633, %v635
      %v675 = vsel %vm654, %v635, %v637
      %v676 = vsel %vm654, %v639, %v641
      %v677 = vsel %vm654, %v641, %v643
      %v678 = vsel %vm654, %v643, %v645
      %v679 = vsel %vm654, %v647, %v649
      %v680 = vsel %vm654, %v649, %v651
      %v681 = vsel %vm654, %v651, %v653
      %vm709 = vcmask 130048
      %v711 = vsel %vm709, %v577, 0
      %v714 = vsel %vm709, %v579, 0
      %716 = vmatprep.subr.bf16.mxu0 %v656
      %717 = vmatpush1.bf16.msra.mxu0 %v655
      %718 = vmatprep.subr.bf16.mxu0 %v659
      %719 = vmatpush1.bf16.msra.mxu0 %v658
      %720 = vmatprep.subr.bf16.mxu0 %v662
      %721 = vmatpush1.bf16.msra.mxu0 %v661
      %722 = vmatprep.subr.bf16.mxu0 %v665
      %723 = vmatpush1.bf16.msra.mxu0 %v664
      %724 = vmatprep.subr.bf16.mxu0 %v668
      %725 = vmatpush1.bf16.msra.mxu0 %v667
      %726 = vmatprep.subr.bf16.mxu0 %v671
      %727 = vmatpush1.bf16.msra.mxu0 %v670
      %728 = vmatprep.subr.bf16.mxu0 %v674
      %729 = vmatpush1.bf16.msra.mxu0 %v673
      %730 = vmatprep.subr.bf16.mxu0 %v677
      %731 = vmatpush1.bf16.msra.mxu0 %v676
      %732 = vmatprep.subr.bf16.mxu0 %v680
      %733 = vmatpush1.bf16.msra.mxu0 %v679
      %734 = vmatprep.subr.bf16.mxu0 0
      %735 = vmatpush1.bf16.msra.mxu0 0
      %736 = vmatprep.subr.bf16.mxu0 0
      %737 = vmatpush1.bf16.msra.mxu0 0
      %738 = vmatprep.subr.bf16.mxu0 0
      %739 = vmatpush1.bf16.msra.mxu0 0
      %740 = vmatprep.subr.bf16.mxu0 0
      %741 = vmatpush1.bf16.msra.mxu0 0
      %742 = vmatprep.subr.bf16.mxu0 0
      %743 = vmatpush1.bf16.msra.mxu0 0
      %744 = vmatprep.subr.bf16.mxu0 0
      %745 = vmatpush1.bf16.msra.mxu0 0
      %746 = vmatprep.subr.bf16.mxu0 0
      %747 = vmatpush1.bf16.msra.mxu0 0
      %748 = vmatprep.mubr.bf16.mxu0 %v711
      %749 = vmatmul.mubr.bf16.gmra.mrb[0].mxu0 %v576
      %v750 = vpop.f32.mrb[0].mxu0
      %v751 = vadd.f32 %v547, %v750
      %v752 = vpop.f32.mrb[0].mxu0
      %v753 = vadd.f32 %v547, %v752
      %v754 = vpop.f32.mrb[0].mxu0
      %v755 = vadd.f32 %v552, %v754
      %v756 = vpop.f32.mrb[0].mxu0
      %v757 = vadd.f32 %v552, %v756
      %758 = vmatprep.mubr.bf16.mxu0 %v714
      %759 = vmatmul.mubr.bf16.gmra.mrb[0].mxu0 %v578
      %v760 = vpop.f32.mrb[0].mxu0
      %v761 = vadd.f32 %v557, %v760
      %v762 = vpop.f32.mrb[0].mxu0
      %v763 = vadd.f32 %v557, %v762
      %v764 = vpop.f32.mrb[0].mxu0
      %v765 = vadd.f32 %v562, %v764
      %v766 = vpop.f32.mrb[0].mxu0
      %v767 = vadd.f32 %v562, %v766
      %768 = vdwg.mxu0
      %769 = vmatprep.subr.bf16.mxu0 0
      %770 = vmatpush1.bf16.msra.mxu0 %v657
      %771 = vmatprep.subr.bf16.mxu0 0
      %772 = vmatpush1.bf16.msra.mxu0 %v660
      %773 = vmatprep.subr.bf16.mxu0 0
      %774 = vmatpush1.bf16.msra.mxu0 %v663
      %775 = vmatprep.subr.bf16.mxu0 0
      %776 = vmatpush1.bf16.msra.mxu0 %v666
      %777 = vmatprep.subr.bf16.mxu0 0
      %778 = vmatpush1.bf16.msra.mxu0 %v669
      %779 = vmatprep.subr.bf16.mxu0 0
      %780 = vmatpush1.bf16.msra.mxu0 %v672
      %781 = vmatprep.subr.bf16.mxu0 0
      %782 = vmatpush1.bf16.msra.mxu0 %v675
      %783 = vmatprep.subr.bf16.mxu0 0
      %784 = vmatpush1.bf16.msra.mxu0 %v678
      %785 = vmatprep.subr.bf16.mxu0 0
      %786 = vmatpush1.bf16.msra.mxu0 %v681
      %787 = vmatprep.subr.bf16.mxu0 0
      %788 = vmatpush1.bf16.msra.mxu0 0
      %789 = vmatprep.subr.bf16.mxu0 0
      %790 = vmatpush1.bf16.msra.mxu0 0
      %791 = vmatprep.subr.bf16.mxu0 0
      %792 = vmatpush1.bf16.msra.mxu0 0
      %793 = vmatprep.subr.bf16.mxu0 0
      %794 = vmatpush1.bf16.msra.mxu0 0
      %795 = vmatprep.subr.bf16.mxu0 0
      %796 = vmatpush1.bf16.msra.mxu0 0
      %797 = vmatprep.subr.bf16.mxu0 0
      %798 = vmatpush1.bf16.msra.mxu0 0
      %799 = vmatprep.subr.bf16.mxu0 0
      %800 = vmatpush1.bf16.msra.mxu0 0
      %801 = vmatprep.mubr.bf16.mxu0 %v711
      %802 = vmatmul.mubr.bf16.gmra.mrb[0].mxu0 %v576
      %v803 = vpop.f32.mrb[0].mxu0
      %v804 = vadd.f32 %v547, %v803
      %v805 = vpop.f32.mrb[0].mxu0
      %v806 = vpop.f32.mrb[0].mxu0
      %v807 = vadd.f32 %v552, %v806
      %v808 = vpop.f32.mrb[0].mxu0
      %809 = vmatprep.mubr.bf16.mxu0 %v714
      %810 = vmatmul.mubr.bf16.gmra.mrb[0].mxu0 %v578
      %v811 = vpop.f32.mrb[0].mxu0
      %v812 = vadd.f32 %v557, %v811
      %v813 = vpop.f32.mrb[0].mxu0
      %v814 = vpop.f32.mrb[0].mxu0
      %v815 = vadd.f32 %v562, %v814
      %v816 = vpop.f32.mrb[0].mxu0
      %817 = vdwg.mxu0
      %v818 = vmax.f32 %v751, 0.0
      %v819 = vmax.f32 %v753, 0.0
      %v820 = vmax.f32 %v804, 0.0
      %v821 = vmax.f32 %v755, 0.0
      %v822 = vmax.f32 %v757, 0.0
      %v823 = vmax.f32 %v807, 0.0
      %v824 = vmax.f32 %v761, 0.0
      %v825 = vmax.f32 %v763, 0.0
      %v826 = vmax.f32 %v812, 0.0
      %v827 = vmax.f32 %v765, 0.0
      %v828 = vmax.f32 %v767, 0.0
      %v829 = vmax.f32 %v815, 0.0
      %830 = vst [vmem:[%s251] sm:$0xff] %v818
      %831 = vst [vmem:[%s251 + $0x8] sm:$0xff] %v819
      %832 = vst [vmem:[%s251 + $0x10] sm:$0xff] %v820
      %833 = vst [vmem:[%s251 + $0x18] sm:$0xff] %v821
      %834 = vst [vmem:[%s251 + $0x20] sm:$0xff] %v822
      %835 = vst [vmem:[%s251 + $0x28] sm:$0xff] %v823
      %836 = vst [vmem:[%s251 + $0x30] sm:$0xff] %v824
      %837 = vst [vmem:[%s251 + $0x38] sm:$0xff] %v825
      %838 = vst [vmem:[%s251 + $0x40] sm:$0xff] %v826
      %839 = vst [vmem:[%s251 + $0x48] sm:$0xff] %v827
      %840 = vst [vmem:[%s251 + $0x50] sm:$0xff] %v828
      %841 = vst [vmem:[%s251 + $0x58] sm:$0xff] %v829
      %p842 = scmp.lt.s32.totalorder %s17, 1
      %s843 = scalar_select %p842, %s17, 1
      %s844 = smul.addr %s843, 12
      %s845 = smul.addr %s844, 8
      %s846 = scalar_lea.vmem %s6, %s845
      // Predicated region
      $region45: #{encoder_block.1} parent=43 // pred_check
        %p847 = pneg %p166
      $region46: #{encoder_block.1} parent=43 // pred_check_branch
        %849 = sbr.rel (%p847) target = $region48
      $region47: #{encoder_block.1} parent=43 // pred_region
        _
      $region48: #{encoder_block.1} parent=43 // pred_fallthru
        _
    $region44: #{encoder_block.1} parent=5 // pred_fallthru
      _
    %p850 = scmp.le.s32.totalorder 2, %s12
    // Predicated region
    $region49: #{encoder_block.1} parent=5 // pred_check
      %p851 = pneg %p850
    $region50: #{encoder_block.1} parent=5 // pred_check_branch
      %853 = sbr.rel (%p851) target = $region52
    $region51: #{encoder_block.1} parent=5 // pred_region
      %s854 = ssub.s32 %s12, 2
      // Predicated region
      $region53: #{encoder_block.1} parent=51 // pred_check
        %p855 = pneg %p172
      $region54: #{encoder_block.1} parent=51 // pred_check_branch
        %857 = sbr.rel (%p855) target = $region56
      $region55: #{encoder_block.1} parent=51 // pred_region
        %p858 = scmp.lt.s32.totalorder %s18, 1
        %s859 = scalar_select %p858, %s18, 1
        %s860 = smul.addr %s859, 12
        %s861 = smul.addr %s860, 8
        %s862 = scalar_lea.vmem %s6, %s861
      $region56: #{encoder_block.1} parent=51 // pred_fallthru
        _
    $region52: #{encoder_block.1} parent=5 // pred_fallthru
      _
  $region6: #{encoder_block.1} parent=0 // loop_footer
    %s16 = sadd.s32 1, %s12
  $region7: #{encoder_block.1} parent=0 // loop_footer_branch
    %11 = sbr.rel target = $region3
  $region8: #{encoder_block.1} parent=0 // loop_exit
    _

</llo_original>
